<compile_context>
chip_gen: v7x
topology: tpu7x:2x2x1
jax: 0.10.0
libtpu: 0.0.40
codegen_flags: <defaults>
</compile_context>

<pallas_src>
import jax
import jax.numpy as jnp
from jax.experimental import pallas as pl
from jax.experimental.pallas import tpu as pltpu


def _dot(a, b):
    return jnp.dot(a, b, preferred_element_type=jnp.float32)


def attn_decoder_kernel(x_ref, h_ref, enc_ref, wa_ref, wc_ref, wg_ref, b_ref, hnew_ref):
    H = hnew_ref.shape[-1]
    L = enc_ref.shape[0]

    x = x_ref[...]               # (1, H)  = input[0]
    h = h_ref[...]               # (1, H)  = hidden[0]

    # attn = Linear(2H -> L)(cat(x, h)); the concat is realized as two sublane-sliced
    # matmuls against the packed (2H, L) weight -- no lane-shuffle needed.
    attn = _dot(x, wa_ref[0:H, :]) + _dot(h, wa_ref[H:2 * H, :]) + b_ref[0:1, 0:L]   # (1, L)

    # softmax over dim=1; the divide goes to the EUP via the approximate reciprocal.
    attn = attn - jnp.max(attn, axis=-1, keepdims=True)
    e = jnp.exp(attn)
    attn_w = e * pl.reciprocal(jnp.sum(e, axis=-1, keepdims=True), approx=True)

    # attn_applied = attn_weights @ encoder_outputs
    applied = _dot(attn_w, enc_ref[...])                                              # (1, H)

    # attn_combine(cat(x, attn_applied)) + ReLU; packed (2H, H) weight, sublane-sliced.
    y = _dot(x, wc_ref[0:H, :]) + _dot(applied, wc_ref[H:2 * H, :]) + b_ref[1:2, 0:H]
    y = jnp.maximum(y, 0.0)                                                           # (1, H)

    # Single-step GRU (PyTorch gate order r, z, n), fused 3H-wide gate matmuls.
    gi = _dot(y, wg_ref[0:H, :]) + b_ref[2:3, 0:3 * H]                                # (1, 3H)
    gh = _dot(h, wg_ref[H:2 * H, :]) + b_ref[3:4, 0:3 * H]                            # (1, 3H)

    r = jax.nn.sigmoid(gi[:, 0:H] + gh[:, 0:H])
    z = jax.nn.sigmoid(gi[:, H:2 * H] + gh[:, H:2 * H])
    n = jnp.tanh(gi[:, 2 * H:3 * H] + r * gh[:, 2 * H:3 * H])
    hnew_ref[...] = (1.0 - z) * n + z * h


def pack_params(params, hidden_size, max_length):
    """One-time parameter prep -- hoisted out of the per-step decode path."""
    H, L = hidden_size, max_length
    W_attn, b_attn, W_comb, b_comb, W_ih, W_hh, b_ih, b_hh = params
    f32 = jnp.float32

    wa = W_attn.T.astype(f32)                                           # (2H, L)  rows: [Wa_x ; Wa_h]
    wc = W_comb.T.astype(f32)                                           # (2H, H)  rows: [Wc_x ; Wc_applied]
    wg = jnp.concatenate([W_ih.T, W_hh.T], axis=0).astype(f32)          # (2H, 3H) rows: [W_ih^T ; W_hh^T]

    bw = max(L, H, 3 * H)

    def row(v):
        v = v.astype(f32)
        return jnp.pad(v, (0, bw - v.shape[0])).reshape(1, bw)

    # Packed bias block: row 0 = b_attn, row 1 = b_comb, row 2 = b_ih, row 3 = b_hh.
    b = jnp.concatenate([row(b_attn), row(b_comb), row(b_ih), row(b_hh)], axis=0)     # (4, bw)
    return wa, wc, wg, b


@jax.jit
def attn_decoder_forward(inp, hidden, enc_out, wa, wc, wg, b):
    """inp, hidden: (1, 1, H); enc_out: (L, H). Returns (output, hidden), each (1, 1, H)."""
    H = inp.shape[-1]
    x = inp.reshape(1, H).astype(jnp.float32)       # metadata-only reshape; no wrapper compute
    h = hidden.reshape(1, H).astype(jnp.float32)
    enc = enc_out.astype(jnp.float32)

    vmem = pl.BlockSpec(memory_space=pltpu.MemorySpace.VMEM)
    h_new = pl.pallas_call(
        attn_decoder_kernel,
        out_shape=jax.ShapeDtypeStruct((1, H), jnp.float32),
        in_specs=[vmem] * 7,
        out_specs=vmem,
    )(x, h, enc, wa, wc, wg, b)

    out = h_new.reshape(1, 1, H)
    # GRU output (seq length 1) and the new hidden state are numerically identical;
    # duplicate in the wrapper instead of paying for a second VMEM->HBM writeback.
    return out, out


def _reference_forward(inp, hidden, enc_out, params):
    """Pure-JAX reference mirroring the PyTorch module."""
    H = inp.shape[-1]
    W_attn, b_attn, W_comb, b_comb, W_ih, W_hh, b_ih, b_hh = params
    x = inp[0]        # (1, H)
    h = hidden[0]     # (1, H)
    attn = jnp.concatenate([x, h], axis=1) @ W_attn.T + b_attn
    attn_w = jax.nn.softmax(attn, axis=1)
    applied = attn_w @ enc_out
    y = jnp.concatenate([x, applied], axis=1) @ W_comb.T + b_comb
    y = jnp.maximum(y, 0.0)
    gi = y @ W_ih.T + b_ih
    gh = h @ W_hh.T + b_hh
    r = jax.nn.sigmoid(gi[:, :H] + gh[:, :H])
    z = jax.nn.sigmoid(gi[:, H:2 * H] + gh[:, H:2 * H])
    n = jnp.tanh(gi[:, 2 * H:] + r * gh[:, 2 * H:])
    h_new = (1.0 - z) * n + z * h
    return h_new[None], h_new[None]


def init_params(key, hidden_size, max_length):
    H, L = hidden_size, max_length
    ks = jax.random.split(key, 8)

    def u(k, shape, fan_in):
        bound = 1.0 / jnp.sqrt(fan_in)
        return jax.random.uniform(k, shape, jnp.float32, -bound, bound)

    W_attn = u(ks[0], (L, 2 * H), 2 * H)
    b_attn = u(ks[1], (L,), 2 * H)
    W_comb = u(ks[2], (H, 2 * H), 2 * H)
    b_comb = u(ks[3], (H,), 2 * H)
    W_ih = u(ks[4], (3 * H, H), H)
    W_hh = u(ks[5], (3 * H, H), H)
    b_ih = u(ks[6], (3 * H,), H)
    b_hh = u(ks[7], (3 * H,), H)
    return (W_attn, b_attn, W_comb, b_comb, W_ih, W_hh, b_ih, b_hh)


if __name__ == "__main__":
    hidden_size = 32
    max_length = 8

    key = jax.random.PRNGKey(0)
    k_p, k_x, k_h, k_e = jax.random.split(key, 4)

    params = init_params(k_p, hidden_size, max_length)
    # One-time prep: pre-transpose / pack all weights and biases (not in the decode loop).
    wa, wc, wg, b = pack_params(params, hidden_size, max_length)

    # Module semantics require batch == 1 (torch.cat((input[0], hidden[0]), 1)).
    inp = jax.random.normal(k_x, (1, 1, hidden_size), jnp.float32)
    hidden = jax.random.normal(k_h, (1, 1, hidden_size), jnp.float32)
    enc_out = jax.random.normal(k_e, (max_length, hidden_size), jnp.float32)

    out, h_new = attn_decoder_forward(inp, hidden, enc_out, wa, wc, wg, b)
    out = jax.block_until_ready(out)
    h_new = jax.block_until_ready(h_new)

    ref_out, ref_h = _reference_forward(inp, hidden, enc_out, params)
    assert out.shape == (1, 1, hidden_size) and h_new.shape == (1, 1, hidden_size)
    # Tolerance accounts for the approximate EUP reciprocal in the softmax (~2^-12 rel err).
    assert jnp.allclose(out, ref_out, atol=2e-3, rtol=2e-3)
    assert jnp.allclose(h_new, ref_h, atol=2e-3, rtol=2e-3)

    print("KERNEL_OK")
</pallas_src>

<mosaic_0001>
module attributes {stable_mosaic.version = 11 : i64} {
  func.func @attn_decoder_kernel(%arg0: memref<1x32xf32, #tpu.memory_space<vmem>>, %arg1: memref<1x32xf32, #tpu.memory_space<vmem>>, %arg2: memref<8x32xf32, #tpu.memory_space<vmem>>, %arg3: memref<64x8xf32, #tpu.memory_space<vmem>>, %arg4: memref<64x32xf32, #tpu.memory_space<vmem>>, %arg5: memref<64x96xf32, #tpu.memory_space<vmem>>, %arg6: memref<4x96xf32, #tpu.memory_space<vmem>>, %arg7: memref<1x32xf32, #tpu.memory_space<vmem>>) attributes {dimension_semantics = [], scalar_prefetch = 0 : i64, scratch_operands = 0 : i64, tpu.core_type = #tpu.core_type<tc>} {
    %c0 = arith.constant 0 : index
    %c0_0 = arith.constant 0 : index
    %0 = vector.load %arg0[%c0, %c0_0] : memref<1x32xf32, #tpu.memory_space<vmem>>, vector<1x32xf32>
    %c0_1 = arith.constant 0 : index
    %c0_2 = arith.constant 0 : index
    %1 = vector.load %arg1[%c0_1, %c0_2] : memref<1x32xf32, #tpu.memory_space<vmem>>, vector<1x32xf32>
    %c0_3 = arith.constant 0 : index
    %c0_4 = arith.constant 0 : index
    %2 = vector.load %arg3[%c0_3, %c0_4] : memref<64x8xf32, #tpu.memory_space<vmem>>, vector<32x8xf32>
    %cst = arith.constant dense<0.000000e+00> : vector<1x8xf32>
    %3 = tpu.matmul %0, %2, %cst {dimension_numbers = #tpu.dot_dimension_numbers<[1], [0], [0], [1], [0, 0, 1, 1], [], []>} : vector<1x32xf32>, vector<32x8xf32>, vector<1x8xf32> -> vector<1x8xf32>
    %c32 = arith.constant 32 : index
    %c0_5 = arith.constant 0 : index
    %4 = vector.load %arg3[%c32, %c0_5] : memref<64x8xf32, #tpu.memory_space<vmem>>, vector<32x8xf32>
    %cst_6 = arith.constant dense<0.000000e+00> : vector<1x8xf32>
    %5 = tpu.matmul %1, %4, %cst_6 {dimension_numbers = #tpu.dot_dimension_numbers<[1], [0], [0], [1], [0, 0, 1, 1], [], []>} : vector<1x32xf32>, vector<32x8xf32>, vector<1x8xf32> -> vector<1x8xf32>
    %6 = arith.addf %3, %5 : vector<1x8xf32>
    %c0_7 = arith.constant 0 : index
    %c0_8 = arith.constant 0 : index
    %7 = vector.load %arg6[%c0_7, %c0_8] : memref<4x96xf32, #tpu.memory_space<vmem>>, vector<1x8xf32>
    %8 = arith.addf %6, %7 : vector<1x8xf32>
    %cst_9 = arith.constant dense<0xFF800000> : vector<1xf32>
    %9 = vector.multi_reduction <maximumf>, %8, %cst_9 [1] : vector<1x8xf32> to vector<1xf32>
    %10 = vector.shape_cast %9 : vector<1xf32> to vector<1x1xf32>
    %11 = vector.broadcast %10 : vector<1x1xf32> to vector<1x8xf32>
    %12 = arith.subf %8, %11 : vector<1x8xf32>
    %13 = math.exp %12 : vector<1x8xf32>
    %cst_10 = arith.constant dense<0.000000e+00> : vector<1xf32>
    %14 = vector.multi_reduction <add>, %13, %cst_10 [1] : vector<1x8xf32> to vector<1xf32>
    %15 = vector.shape_cast %14 : vector<1xf32> to vector<1x1xf32>
    %16 = tpu.reciprocal %15 {approx = true} : vector<1x1xf32> -> vector<1x1xf32>
    %17 = vector.broadcast %16 : vector<1x1xf32> to vector<1x8xf32>
    %18 = arith.mulf %13, %17 : vector<1x8xf32>
    %c0_11 = arith.constant 0 : index
    %c0_12 = arith.constant 0 : index
    %19 = vector.load %arg2[%c0_11, %c0_12] : memref<8x32xf32, #tpu.memory_space<vmem>>, vector<8x32xf32>
    %cst_13 = arith.constant dense<0.000000e+00> : vector<1x32xf32>
    %20 = tpu.matmul %18, %19, %cst_13 {dimension_numbers = #tpu.dot_dimension_numbers<[1], [0], [0], [1], [0, 0, 1, 1], [], []>} : vector<1x8xf32>, vector<8x32xf32>, vector<1x32xf32> -> vector<1x32xf32>
    %c0_14 = arith.constant 0 : index
    %c0_15 = arith.constant 0 : index
    %21 = vector.load %arg4[%c0_14, %c0_15] : memref<64x32xf32, #tpu.memory_space<vmem>>, vector<32x32xf32>
    %cst_16 = arith.constant dense<0.000000e+00> : vector<1x32xf32>
    %22 = tpu.matmul %0, %21, %cst_16 {dimension_numbers = #tpu.dot_dimension_numbers<[1], [0], [0], [1], [0, 0, 1, 1], [], []>} : vector<1x32xf32>, vector<32x32xf32>, vector<1x32xf32> -> vector<1x32xf32>
    %c32_17 = arith.constant 32 : index
    %c0_18 = arith.constant 0 : index
    %23 = vector.load %arg4[%c32_17, %c0_18] : memref<64x32xf32, #tpu.memory_space<vmem>>, vector<32x32xf32>
    %cst_19 = arith.constant dense<0.000000e+00> : vector<1x32xf32>
    %24 = tpu.matmul %20, %23, %cst_19 {dimension_numbers = #tpu.dot_dimension_numbers<[1], [0], [0], [1], [0, 0, 1, 1], [], []>} : vector<1x32xf32>, vector<32x32xf32>, vector<1x32xf32> -> vector<1x32xf32>
    %25 = arith.addf %22, %24 : vector<1x32xf32>
    %c1 = arith.constant 1 : index
    %c0_20 = arith.constant 0 : index
    %26 = vector.load %arg6[%c1, %c0_20] : memref<4x96xf32, #tpu.memory_space<vmem>>, vector<1x32xf32>
    %27 = arith.addf %25, %26 : vector<1x32xf32>
    %cst_21 = arith.constant 0.000000e+00 : f32
    %28 = vector.broadcast %cst_21 : f32 to vector<1x32xf32>
    %29 = arith.maximumf %27, %28 : vector<1x32xf32>
    %c0_22 = arith.constant 0 : index
    %c0_23 = arith.constant 0 : index
    %30 = vector.load %arg5[%c0_22, %c0_23] : memref<64x96xf32, #tpu.memory_space<vmem>>, vector<32x96xf32>
    %cst_24 = arith.constant dense<0.000000e+00> : vector<1x96xf32>
    %31 = tpu.matmul %29, %30, %cst_24 {dimension_numbers = #tpu.dot_dimension_numbers<[1], [0], [0], [1], [0, 0, 1, 1], [], []>} : vector<1x32xf32>, vector<32x96xf32>, vector<1x96xf32> -> vector<1x96xf32>
    %c2 = arith.constant 2 : index
    %c0_25 = arith.constant 0 : index
    %32 = vector.load %arg6[%c2, %c0_25] : memref<4x96xf32, #tpu.memory_space<vmem>>, vector<1x96xf32>
    %33 = arith.addf %31, %32 : vector<1x96xf32>
    %c32_26 = arith.constant 32 : index
    %c0_27 = arith.constant 0 : index
    %34 = vector.load %arg5[%c32_26, %c0_27] : memref<64x96xf32, #tpu.memory_space<vmem>>, vector<32x96xf32>
    %cst_28 = arith.constant dense<0.000000e+00> : vector<1x96xf32>
    %35 = tpu.matmul %1, %34, %cst_28 {dimension_numbers = #tpu.dot_dimension_numbers<[1], [0], [0], [1], [0, 0, 1, 1], [], []>} : vector<1x32xf32>, vector<32x96xf32>, vector<1x96xf32> -> vector<1x96xf32>
    %c3 = arith.constant 3 : index
    %c0_29 = arith.constant 0 : index
    %36 = vector.load %arg6[%c3, %c0_29] : memref<4x96xf32, #tpu.memory_space<vmem>>, vector<1x96xf32>
    %37 = arith.addf %35, %36 : vector<1x96xf32>
    %38 = vector.extract_strided_slice %33 {offsets = [0, 0], sizes = [1, 32], strides = [1, 1]} : vector<1x96xf32> to vector<1x32xf32>
    %39 = vector.extract_strided_slice %37 {offsets = [0, 0], sizes = [1, 32], strides = [1, 1]} : vector<1x96xf32> to vector<1x32xf32>
    %40 = arith.addf %38, %39 : vector<1x32xf32>
    %41 = arith.negf %40 : vector<1x32xf32>
    %42 = math.exp %41 : vector<1x32xf32>
    %cst_30 = arith.constant 1.000000e+00 : f32
    %43 = vector.broadcast %cst_30 : f32 to vector<1x32xf32>
    %44 = arith.addf %43, %42 : vector<1x32xf32>
    %45 = arith.divf %43, %44 : vector<1x32xf32>
    %46 = vector.extract_strided_slice %33 {offsets = [0, 32], sizes = [1, 32], strides = [1, 1]} : vector<1x96xf32> to vector<1x32xf32>
    %47 = vector.extract_strided_slice %37 {offsets = [0, 32], sizes = [1, 32], strides = [1, 1]} : vector<1x96xf32> to vector<1x32xf32>
    %48 = arith.addf %46, %47 : vector<1x32xf32>
    %49 = arith.negf %48 : vector<1x32xf32>
    %50 = math.exp %49 : vector<1x32xf32>
    %cst_31 = arith.constant 1.000000e+00 : f32
    %51 = vector.broadcast %cst_31 : f32 to vector<1x32xf32>
    %52 = arith.addf %51, %50 : vector<1x32xf32>
    %53 = arith.divf %51, %52 : vector<1x32xf32>
    %54 = vector.extract_strided_slice %33 {offsets = [0, 64], sizes = [1, 32], strides = [1, 1]} : vector<1x96xf32> to vector<1x32xf32>
    %55 = vector.extract_strided_slice %37 {offsets = [0, 64], sizes = [1, 32], strides = [1, 1]} : vector<1x96xf32> to vector<1x32xf32>
    %56 = arith.mulf %45, %55 : vector<1x32xf32>
    %57 = arith.addf %54, %56 : vector<1x32xf32>
    %58 = math.tanh %57 : vector<1x32xf32>
    %cst_32 = arith.constant 1.000000e+00 : f32
    %59 = vector.broadcast %cst_32 : f32 to vector<1x32xf32>
    %60 = arith.subf %59, %53 : vector<1x32xf32>
    %61 = arith.mulf %60, %58 : vector<1x32xf32>
    %62 = arith.mulf %53, %1 : vector<1x32xf32>
    %63 = arith.addf %61, %62 : vector<1x32xf32>
    %c0_33 = arith.constant 0 : index
    %c0_34 = arith.constant 0 : index
    %64 = vector.load %arg7[%c0_33, %c0_34] : memref<1x32xf32, #tpu.memory_space<vmem>>, vector<1x32xf32>
    tpu.vector_store %arg7[%c0_33, %c0_34], %63 {strides = array<i32>} : memref<1x32xf32, #tpu.memory_space<vmem>>, vector<1x32xf32>,
    return
  }
}

</mosaic_0001>

<llo_original>
// kernel: attn_decoder_forward.1
$region0: #{attn_decoder_forward.1}
  #allocation0 [shape = 'u32[]', space=smem, size = 0x4, offset = 0x4, fixed_abs, tag = 'smem constant byte address 0x4 - core index']
  #allocation1 [shape = 'u32[144,128]{1,0:T(1,128)}', space=vmem, size = 0x12000, scoped, tag = 'internal scratch']
  %s0 = inlined_call_operand.vmem [shape: f32[1,32], index: 0, kind: input, shape index: {}]
  %s1 = inlined_call_operand.vmem [shape: f32[1,32], index: 1, kind: input, shape index: {}]
  %s2 = inlined_call_operand.vmem [shape: f32[8,32], index: 2, kind: input, shape index: {}]
  %s3 = inlined_call_operand.vmem [shape: f32[64,8], index: 3, kind: input, shape index: {}]
  %s4 = inlined_call_operand.vmem [shape: f32[64,32], index: 4, kind: input, shape index: {}]
  %s5 = inlined_call_operand.vmem [shape: f32[64,96], index: 5, kind: input, shape index: {}]
  %s6 = inlined_call_operand.vmem [shape: f32[4,96], index: 6, kind: input, shape index: {}]
  %s7 = inlined_call_operand.vmem [shape: f32[1,32], index: 7, kind: output, shape index: {}]
  %s8 = sld [smem:[#allocation0]]
  $region38: #{attn_decoder_forward.1} parent=0
    _
  %s10 = ssub.s32 1, %s8
  %s11 = scalar_select 0, %s10, %s8
  // Predicated region
  $region2: #{attn_decoder_forward.1} parent=0 // pred_check
    _
  $region3: #{attn_decoder_forward.1} parent=0 // pred_check_branch
    %13 = sbr.rel (0) target = $region5
  $region4: #{attn_decoder_forward.1} parent=0 // pred_region
    _
  $region5: #{attn_decoder_forward.1} parent=0 // pred_fallthru
    _
  // Predicated region
  $region6: #{attn_decoder_forward.1} parent=0 // pred_check
    _
  $region7: #{attn_decoder_forward.1} parent=0 // pred_check_branch
    %15 = sbr.rel (0) target = $region9
  $region8: #{attn_decoder_forward.1} parent=0 // pred_region
    _
  $region9: #{attn_decoder_forward.1} parent=0 // pred_fallthru
    _
  // Predicated region
  $region10: #{attn_decoder_forward.1} parent=0 // pred_check
    _
  $region11: #{attn_decoder_forward.1} parent=0 // pred_check_branch
    %17 = sbr.rel (0) target = $region13
  $region12: #{attn_decoder_forward.1} parent=0 // pred_region
    _
  $region13: #{attn_decoder_forward.1} parent=0 // pred_fallthru
    _
  // Predicated region
  $region14: #{attn_decoder_forward.1} parent=0 // pred_check
    _
  $region15: #{attn_decoder_forward.1} parent=0 // pred_check_branch
    %19 = sbr.rel (0) target = $region17
  $region16: #{attn_decoder_forward.1} parent=0 // pred_region
    _
  $region17: #{attn_decoder_forward.1} parent=0 // pred_fallthru
    _
  // Predicated region
  $region18: #{attn_decoder_forward.1} parent=0 // pred_check
    _
  $region19: #{attn_decoder_forward.1} parent=0 // pred_check_branch
    %21 = sbr.rel (0) target = $region21
  $region20: #{attn_decoder_forward.1} parent=0 // pred_region
    _
  $region21: #{attn_decoder_forward.1} parent=0 // pred_fallthru
    _
  // Predicated region
  $region22: #{attn_decoder_forward.1} parent=0 // pred_check
    _
  $region23: #{attn_decoder_forward.1} parent=0 // pred_check_branch
    %23 = sbr.rel (0) target = $region25
  $region24: #{attn_decoder_forward.1} parent=0 // pred_region
    _
  $region25: #{attn_decoder_forward.1} parent=0 // pred_fallthru
    _
  // Predicated region
  $region26: #{attn_decoder_forward.1} parent=0 // pred_check
    _
  $region27: #{attn_decoder_forward.1} parent=0 // pred_check_branch
    %25 = sbr.rel (0) target = $region29
  $region28: #{attn_decoder_forward.1} parent=0 // pred_region
    _
  $region29: #{attn_decoder_forward.1} parent=0 // pred_fallthru
    _
  %v26 = vld [vmem:[%s0] sm:$0x1]
  %v27 = vld [vmem:[%s1] sm:$0x1]
  %v28 = vld [vmem:[%s3] sm:$0xff]
  %v29 = vld [vmem:[%s3 + $0x8] sm:$0xff]
  %v30 = vld [vmem:[%s3 + $0x10] sm:$0xff]
  %v31 = vld [vmem:[%s3 + $0x18] sm:$0xff]
  %v32 = vld [vmem:[%s3 + $0x20] sm:$0xff]
  %v33 = vld [vmem:[%s3 + $0x28] sm:$0xff]
  %v34 = vld [vmem:[%s3 + $0x30] sm:$0xff]
  %v35 = vld [vmem:[%s3 + $0x38] sm:$0xff]
  %vm36 = vcmask 261120
  %v38 = vsel %vm36, %v27, 0
  %40 = vmatprep.subr.mxu0 0.0
  %41 = vmatpush1.msra.mxu0 %v32
  %42 = vmatprep.subr.mxu0 0.0
  %43 = vmatpush1.msra.mxu0 %v33
  %44 = vmatprep.subr.mxu0 0.0
  %45 = vmatpush1.msra.mxu0 %v34
  %46 = vmatprep.subr.mxu0 0.0
  %47 = vmatpush1.msra.mxu0 %v35
  %48 = vmatprep.subr.mxu0 0.0
  %49 = vmatpush1.msra.mxu0 0.0
  %50 = vmatprep.subr.mxu0 0.0
  %51 = vmatpush1.msra.mxu0 0.0
  %52 = vmatprep.subr.mxu0 0.0
  %53 = vmatpush1.msra.mxu0 0.0
  %54 = vmatprep.subr.mxu0 0.0
  %55 = vmatpush1.msra.mxu0 0.0
  %56 = vmatprep.subr.mxu0 0.0
  %57 = vmatpush1.msra.mxu0 0.0
  %58 = vmatprep.subr.mxu0 0.0
  %59 = vmatpush1.msra.mxu0 0.0
  %60 = vmatprep.subr.mxu0 0.0
  %61 = vmatpush1.msra.mxu0 0.0
  %62 = vmatprep.subr.mxu0 0.0
  %63 = vmatpush1.msra.mxu0 0.0
  %64 = vmatprep.subr.mxu0 0.0
  %65 = vmatpush1.msra.mxu0 0.0
  %66 = vmatprep.subr.mxu0 0.0
  %67 = vmatpush1.msra.mxu0 0.0
  %68 = vmatprep.subr.mxu0 0.0
  %69 = vmatpush1.msra.mxu0 0.0
  %70 = vmatprep.subr.mxu0 0.0
  %71 = vmatpush1.msra.mxu0 0.0
  %72 = vmatprep.subr.mxu0 0.0
  %73 = vmatpush1.msra.mxu0 0.0
  %74 = vmatprep.subr.mxu0 0.0
  %75 = vmatpush1.msra.mxu0 0.0
  %76 = vmatprep.subr.mxu0 0.0
  %77 = vmatpush1.msra.mxu0 0.0
  %78 = vmatprep.subr.mxu0 0.0
  %79 = vmatpush1.msra.mxu0 0.0
  %80 = vmatprep.subr.mxu0 0.0
  %81 = vmatpush1.msra.mxu0 0.0
  %82 = vmatprep.subr.mxu0 0.0
  %83 = vmatpush1.msra.mxu0 0.0
  %84 = vmatprep.subr.mxu0 0.0
  %85 = vmatpush1.msra.mxu0 0.0
  %86 = vmatprep.subr.mxu0 0.0
  %87 = vmatpush1.msra.mxu0 0.0
  %88 = vmatprep.subr.mxu0 0.0
  %89 = vmatpush1.msra.mxu0 0.0
  %90 = vmatprep.subr.mxu0 0.0
  %91 = vmatpush1.msra.mxu0 0.0
  %92 = vmatprep.subr.mxu0 0.0
  %93 = vmatpush1.msra.mxu0 0.0
  %94 = vmatprep.subr.mxu0 0.0
  %95 = vmatpush1.msra.mxu0 0.0
  %96 = vmatprep.subr.mxu0 0.0
  %97 = vmatpush1.msra.mxu0 0.0
  %98 = vmatprep.subr.mxu0 0.0
  %99 = vmatpush1.msra.mxu0 0.0
  %100 = vmatprep.subr.mxu0 0.0
  %101 = vmatpush1.msra.mxu0 0.0
  %102 = vmatprep.subr.mxu0 0.0
  %103 = vmatpush1.msra.mxu0 0.0
  %104 = vmatprep.mubr.f32.mxu0 0.0
  %105 = vmatmul.mubr.f32.gmra.mrb[0].mxu0 %v38
  %v106 = vpop.f32.mrb[0].mxu0
  %v107 = vadd.f32 0.0, %v106
  %v108 = vpop.f32.mrb[0].mxu0
  %109 = vdwg.mxu0
  %v111 = vsel %vm36, %v26, 0
  %113 = vmatprep.subr.mxu0 0.0
  %114 = vmatpush1.msra.mxu0 %v28
  %115 = vmatprep.subr.mxu0 0.0
  %116 = vmatpush1.msra.mxu0 %v29
  %117 = vmatprep.subr.mxu0 0.0
  %118 = vmatpush1.msra.mxu0 %v30
  %119 = vmatprep.subr.mxu0 0.0
  %120 = vmatpush1.msra.mxu0 %v31
  %121 = vmatprep.subr.mxu0 0.0
  %122 = vmatpush1.msra.mxu0 0.0
  %123 = vmatprep.subr.mxu0 0.0
  %124 = vmatpush1.msra.mxu0 0.0
  %125 = vmatprep.subr.mxu0 0.0
  %126 = vmatpush1.msra.mxu0 0.0
  %127 = vmatprep.subr.mxu0 0.0
  %128 = vmatpush1.msra.mxu0 0.0
  %129 = vmatprep.subr.mxu0 0.0
  %130 = vmatpush1.msra.mxu0 0.0
  %131 = vmatprep.subr.mxu0 0.0
  %132 = vmatpush1.msra.mxu0 0.0
  %133 = vmatprep.subr.mxu0 0.0
  %134 = vmatpush1.msra.mxu0 0.0
  %135 = vmatprep.subr.mxu0 0.0
  %136 = vmatpush1.msra.mxu0 0.0
  %137 = vmatprep.subr.mxu0 0.0
  %138 = vmatpush1.msra.mxu0 0.0
  %139 = vmatprep.subr.mxu0 0.0
  %140 = vmatpush1.msra.mxu0 0.0
  %141 = vmatprep.subr.mxu0 0.0
  %142 = vmatpush1.msra.mxu0 0.0
  %143 = vmatprep.subr.mxu0 0.0
  %144 = vmatpush1.msra.mxu0 0.0
  %145 = vmatprep.subr.mxu0 0.0
  %146 = vmatpush1.msra.mxu0 0.0
  %147 = vmatprep.subr.mxu0 0.0
  %148 = vmatpush1.msra.mxu0 0.0
  %149 = vmatprep.subr.mxu0 0.0
  %150 = vmatpush1.msra.mxu0 0.0
  %151 = vmatprep.subr.mxu0 0.0
  %152 = vmatpush1.msra.mxu0 0.0
  %153 = vmatprep.subr.mxu0 0.0
  %154 = vmatpush1.msra.mxu0 0.0
  %155 = vmatprep.subr.mxu0 0.0
  %156 = vmatpush1.msra.mxu0 0.0
  %157 = vmatprep.subr.mxu0 0.0
  %158 = vmatpush1.msra.mxu0 0.0
  %159 = vmatprep.subr.mxu0 0.0
  %160 = vmatpush1.msra.mxu0 0.0
  %161 = vmatprep.subr.mxu0 0.0
  %162 = vmatpush1.msra.mxu0 0.0
  %163 = vmatprep.subr.mxu0 0.0
  %164 = vmatpush1.msra.mxu0 0.0
  %165 = vmatprep.subr.mxu0 0.0
  %166 = vmatpush1.msra.mxu0 0.0
  %167 = vmatprep.subr.mxu0 0.0
  %168 = vmatpush1.msra.mxu0 0.0
  %169 = vmatprep.subr.mxu0 0.0
  %170 = vmatpush1.msra.mxu0 0.0
  %171 = vmatprep.subr.mxu0 0.0
  %172 = vmatpush1.msra.mxu0 0.0
  %173 = vmatprep.subr.mxu0 0.0
  %174 = vmatpush1.msra.mxu0 0.0
  %175 = vmatprep.subr.mxu0 0.0
  %176 = vmatpush1.msra.mxu0 0.0
  %177 = vmatprep.mubr.f32.mxu0 0.0
  %178 = vmatmul.mubr.f32.gmra.mrb[0].mxu0 %v111
  %v179 = vpop.f32.mrb[0].mxu0
  %v180 = vadd.f32 %v107, %v179
  %v181 = vpop.f32.mrb[0].mxu0
  %182 = vdwg.mxu0
  %v183 = vld [vmem:[%s6] sm:$0x1]
  %v184 = vadd.f32 %v180, %v183
  %vm185 = vcmask 57344
  %v186 = vsel %vm185, %v184, -inf
  %187 = vmax.xlane.f32.xlu0 %v186
  %v188 = vpop.xlane.xlu0 %187
  %v189 = vsub.f32 %v184, %v188
  %v190 = vmul.f32 %v189, 1.442695
  %v191 = vpow.pop %v190
  %v192 = vsel %vm185, %v191, 0.0
  %193 = vadd.xlane.f32.xlu0 %v192
  %v194 = vpop.xlane.xlu0 %193
  %v195 = vrcp.pop %v194
  %v196 = vmul.f32 %v191, %v195
  %v197 = vld [vmem:[%s2] sm:$0xff]
  %vm198 = vcmask 64512
  %v200 = vsel %vm198, %v196, 0
  %202 = vmatprep.subr.mxu0 0.0
  %203 = vmatpush1.msra.mxu0 %v197
  %204 = vmatprep.subr.mxu0 0.0
  %205 = vmatpush1.msra.mxu0 0.0
  %206 = vmatprep.subr.mxu0 0.0
  %207 = vmatpush1.msra.mxu0 0.0
  %208 = vmatprep.subr.mxu0 0.0
  %209 = vmatpush1.msra.mxu0 0.0
  %210 = vmatprep.subr.mxu0 0.0
  %211 = vmatpush1.msra.mxu0 0.0
  %212 = vmatprep.subr.mxu0 0.0
  %213 = vmatpush1.msra.mxu0 0.0
  %214 = vmatprep.subr.mxu0 0.0
  %215 = vmatpush1.msra.mxu0 0.0
  %216 = vmatprep.subr.mxu0 0.0
  %217 = vmatpush1.msra.mxu0 0.0
  %218 = vmatprep.subr.mxu0 0.0
  %219 = vmatpush1.msra.mxu0 0.0
  %220 = vmatprep.subr.mxu0 0.0
  %221 = vmatpush1.msra.mxu0 0.0
  %222 = vmatprep.subr.mxu0 0.0
  %223 = vmatpush1.msra.mxu0 0.0
  %224 = vmatprep.subr.mxu0 0.0
  %225 = vmatpush1.msra.mxu0 0.0
  %226 = vmatprep.subr.mxu0 0.0
  %227 = vmatpush1.msra.mxu0 0.0
  %228 = vmatprep.subr.mxu0 0.0
  %229 = vmatpush1.msra.mxu0 0.0
  %230 = vmatprep.subr.mxu0 0.0
  %231 = vmatpush1.msra.mxu0 0.0
  %232 = vmatprep.subr.mxu0 0.0
  %233 = vmatpush1.msra.mxu0 0.0
  %234 = vmatprep.subr.mxu0 0.0
  %235 = vmatpush1.msra.mxu0 0.0
  %236 = vmatprep.subr.mxu0 0.0
  %237 = vmatpush1.msra.mxu0 0.0
  %238 = vmatprep.subr.mxu0 0.0
  %239 = vmatpush1.msra.mxu0 0.0
  %240 = vmatprep.subr.mxu0 0.0
  %241 = vmatpush1.msra.mxu0 0.0
  %242 = vmatprep.subr.mxu0 0.0
  %243 = vmatpush1.msra.mxu0 0.0
  %244 = vmatprep.subr.mxu0 0.0
  %245 = vmatpush1.msra.mxu0 0.0
  %246 = vmatprep.subr.mxu0 0.0
  %247 = vmatpush1.msra.mxu0 0.0
  %248 = vmatprep.subr.mxu0 0.0
  %249 = vmatpush1.msra.mxu0 0.0
  %250 = vmatprep.subr.mxu0 0.0
  %251 = vmatpush1.msra.mxu0 0.0
  %252 = vmatprep.subr.mxu0 0.0
  %253 = vmatpush1.msra.mxu0 0.0
  %254 = vmatprep.subr.mxu0 0.0
  %255 = vmatpush1.msra.mxu0 0.0
  %256 = vmatprep.subr.mxu0 0.0
  %257 = vmatpush1.msra.mxu0 0.0
  %258 = vmatprep.subr.mxu0 0.0
  %259 = vmatpush1.msra.mxu0 0.0
  %260 = vmatprep.subr.mxu0 0.0
  %261 = vmatpush1.msra.mxu0 0.0
  %262 = vmatprep.subr.mxu0 0.0
  %263 = vmatpush1.msra.mxu0 0.0
  %264 = vmatprep.subr.mxu0 0.0
  %265 = vmatpush1.msra.mxu0 0.0
  %266 = vmatprep.mubr.f32.mxu0 0.0
  %267 = vmatmul.mubr.f32.gmra.mrb[0].mxu0 %v200
  %v268 = vpop.f32.mrb[0].mxu0
  %v269 = vadd.f32 0.0, %v268
  %v270 = vpop.f32.mrb[0].mxu0
  %271 = vdwg.mxu0
  %v272 = vld [vmem:[%s4] sm:$0xff]
  %v273 = vld [vmem:[%s4 + $0x8] sm:$0xff]
  %v274 = vld [vmem:[%s4 + $0x10] sm:$0xff]
  %v275 = vld [vmem:[%s4 + $0x18] sm:$0xff]
  %v276 = vld [vmem:[%s4 + $0x20] sm:$0xff]
  %v277 = vld [vmem:[%s4 + $0x28] sm:$0xff]
  %v278 = vld [vmem:[%s4 + $0x30] sm:$0xff]
  %v279 = vld [vmem:[%s4 + $0x38] sm:$0xff]
  %v281 = vsel %vm36, %v269, 0
  %283 = vmatprep.subr.mxu0 0.0
  %284 = vmatpush1.msra.mxu0 %v276
  %285 = vmatprep.subr.mxu0 0.0
  %286 = vmatpush1.msra.mxu0 %v277
  %287 = vmatprep.subr.mxu0 0.0
  %288 = vmatpush1.msra.mxu0 %v278
  %289 = vmatprep.subr.mxu0 0.0
  %290 = vmatpush1.msra.mxu0 %v279
  %291 = vmatprep.subr.mxu0 0.0
  %292 = vmatpush1.msra.mxu0 0.0
  %293 = vmatprep.subr.mxu0 0.0
  %294 = vmatpush1.msra.mxu0 0.0
  %295 = vmatprep.subr.mxu0 0.0
  %296 = vmatpush1.msra.mxu0 0.0
  %297 = vmatprep.subr.mxu0 0.0
  %298 = vmatpush1.msra.mxu0 0.0
  %299 = vmatprep.subr.mxu0 0.0
  %300 = vmatpush1.msra.mxu0 0.0
  %301 = vmatprep.subr.mxu0 0.0
  %302 = vmatpush1.msra.mxu0 0.0
  %303 = vmatprep.subr.mxu0 0.0
  %304 = vmatpush1.msra.mxu0 0.0
  %305 = vmatprep.subr.mxu0 0.0
  %306 = vmatpush1.msra.mxu0 0.0
  %307 = vmatprep.subr.mxu0 0.0
  %308 = vmatpush1.msra.mxu0 0.0
  %309 = vmatprep.subr.mxu0 0.0
  %310 = vmatpush1.msra.mxu0 0.0
  %311 = vmatprep.subr.mxu0 0.0
  %312 = vmatpush1.msra.mxu0 0.0
  %313 = vmatprep.subr.mxu0 0.0
  %314 = vmatpush1.msra.mxu0 0.0
  %315 = vmatprep.subr.mxu0 0.0
  %316 = vmatpush1.msra.mxu0 0.0
  %317 = vmatprep.subr.mxu0 0.0
  %318 = vmatpush1.msra.mxu0 0.0
  %319 = vmatprep.subr.mxu0 0.0
  %320 = vmatpush1.msra.mxu0 0.0
  %321 = vmatprep.subr.mxu0 0.0
  %322 = vmatpush1.msra.mxu0 0.0
  %323 = vmatprep.subr.mxu0 0.0
  %324 = vmatpush1.msra.mxu0 0.0
  %325 = vmatprep.subr.mxu0 0.0
  %326 = vmatpush1.msra.mxu0 0.0
  %327 = vmatprep.subr.mxu0 0.0
  %328 = vmatpush1.msra.mxu0 0.0
  %329 = vmatprep.subr.mxu0 0.0
  %330 = vmatpush1.msra.mxu0 0.0
  %331 = vmatprep.subr.mxu0 0.0
  %332 = vmatpush1.msra.mxu0 0.0
  %333 = vmatprep.subr.mxu0 0.0
  %334 = vmatpush1.msra.mxu0 0.0
  %335 = vmatprep.subr.mxu0 0.0
  %336 = vmatpush1.msra.mxu0 0.0
  %337 = vmatprep.subr.mxu0 0.0
  %338 = vmatpush1.msra.mxu0 0.0
  %339 = vmatprep.subr.mxu0 0.0
  %340 = vmatpush1.msra.mxu0 0.0
  %341 = vmatprep.subr.mxu0 0.0
  %342 = vmatpush1.msra.mxu0 0.0
  %343 = vmatprep.subr.mxu0 0.0
  %344 = vmatpush1.msra.mxu0 0.0
  %345 = vmatprep.subr.mxu0 0.0
  %346 = vmatpush1.msra.mxu0 0.0
  %347 = vmatprep.mubr.f32.mxu0 0.0
  %348 = vmatmul.mubr.f32.gmra.mrb[0].mxu0 %v281
  %v349 = vpop.f32.mrb[0].mxu0
  %v350 = vadd.f32 0.0, %v349
  %v351 = vpop.f32.mrb[0].mxu0
  %352 = vdwg.mxu0
  %353 = vmatprep.subr.mxu0 0.0
  %354 = vmatpush1.msra.mxu0 %v272
  %355 = vmatprep.subr.mxu0 0.0
  %356 = vmatpush1.msra.mxu0 %v273
  %357 = vmatprep.subr.mxu0 0.0
  %358 = vmatpush1.msra.mxu0 %v274
  %359 = vmatprep.subr.mxu0 0.0
  %360 = vmatpush1.msra.mxu0 %v275
  %361 = vmatprep.subr.mxu0 0.0
  %362 = vmatpush1.msra.mxu0 0.0
  %363 = vmatprep.subr.mxu0 0.0
  %364 = vmatpush1.msra.mxu0 0.0
  %365 = vmatprep.subr.mxu0 0.0
  %366 = vmatpush1.msra.mxu0 0.0
  %367 = vmatprep.subr.mxu0 0.0
  %368 = vmatpush1.msra.mxu0 0.0
  %369 = vmatprep.subr.mxu0 0.0
  %370 = vmatpush1.msra.mxu0 0.0
  %371 = vmatprep.subr.mxu0 0.0
  %372 = vmatpush1.msra.mxu0 0.0
  %373 = vmatprep.subr.mxu0 0.0
  %374 = vmatpush1.msra.mxu0 0.0
  %375 = vmatprep.subr.mxu0 0.0
  %376 = vmatpush1.msra.mxu0 0.0
  %377 = vmatprep.subr.mxu0 0.0
  %378 = vmatpush1.msra.mxu0 0.0
  %379 = vmatprep.subr.mxu0 0.0
  %380 = vmatpush1.msra.mxu0 0.0
  %381 = vmatprep.subr.mxu0 0.0
  %382 = vmatpush1.msra.mxu0 0.0
  %383 = vmatprep.subr.mxu0 0.0
  %384 = vmatpush1.msra.mxu0 0.0
  %385 = vmatprep.subr.mxu0 0.0
  %386 = vmatpush1.msra.mxu0 0.0
  %387 = vmatprep.subr.mxu0 0.0
  %388 = vmatpush1.msra.mxu0 0.0
  %389 = vmatprep.subr.mxu0 0.0
  %390 = vmatpush1.msra.mxu0 0.0
  %391 = vmatprep.subr.mxu0 0.0
  %392 = vmatpush1.msra.mxu0 0.0
  %393 = vmatprep.subr.mxu0 0.0
  %394 = vmatpush1.msra.mxu0 0.0
  %395 = vmatprep.subr.mxu0 0.0
  %396 = vmatpush1.msra.mxu0 0.0
  %397 = vmatprep.subr.mxu0 0.0
  %398 = vmatpush1.msra.mxu0 0.0
  %399 = vmatprep.subr.mxu0 0.0
  %400 = vmatpush1.msra.mxu0 0.0
  %401 = vmatprep.subr.mxu0 0.0
  %402 = vmatpush1.msra.mxu0 0.0
  %403 = vmatprep.subr.mxu0 0.0
  %404 = vmatpush1.msra.mxu0 0.0
  %405 = vmatprep.subr.mxu0 0.0
  %406 = vmatpush1.msra.mxu0 0.0
  %407 = vmatprep.subr.mxu0 0.0
  %408 = vmatpush1.msra.mxu0 0.0
  %409 = vmatprep.subr.mxu0 0.0
  %410 = vmatpush1.msra.mxu0 0.0
  %411 = vmatprep.subr.mxu0 0.0
  %412 = vmatpush1.msra.mxu0 0.0
  %413 = vmatprep.subr.mxu0 0.0
  %414 = vmatpush1.msra.mxu0 0.0
  %415 = vmatprep.subr.mxu0 0.0
  %416 = vmatpush1.msra.mxu0 0.0
  %417 = vmatprep.mubr.f32.mxu0 0.0
  %418 = vmatmul.mubr.f32.gmra.mrb[0].mxu0 %v111
  %v419 = vpop.f32.mrb[0].mxu0
  %v420 = vadd.f32 %v350, %v419
  %v421 = vpop.f32.mrb[0].mxu0
  %422 = vdwg.mxu0
  %v423 = vld [vmem:[%s6 + $0x1] sm:$0x1]
  %v424 = vadd.f32 %v420, %v423
  %v425 = vmax.f32 %v424, 0.0
  %v426 = vld [vmem:[%s5] sm:$0xff]
  %v427 = vld [vmem:[%s5 + $0x8] sm:$0xff]
  %v428 = vld [vmem:[%s5 + $0x10] sm:$0xff]
  %v429 = vld [vmem:[%s5 + $0x18] sm:$0xff]
  %v430 = vld [vmem:[%s6 + $0x2] sm:$0x1]
  %v432 = vsel %vm36, %v425, 0
  %434 = vmatprep.subr.mxu0 0.0
  %435 = vmatpush1.msra.mxu0 %v426
  %436 = vmatprep.subr.mxu0 0.0
  %437 = vmatpush1.msra.mxu0 %v427
  %438 = vmatprep.subr.mxu0 0.0
  %439 = vmatpush1.msra.mxu0 %v428
  %440 = vmatprep.subr.mxu0 0.0
  %441 = vmatpush1.msra.mxu0 %v429
  %442 = vmatprep.subr.mxu0 0.0
  %443 = vmatpush1.msra.mxu0 0.0
  %444 = vmatprep.subr.mxu0 0.0
  %445 = vmatpush1.msra.mxu0 0.0
  %446 = vmatprep.subr.mxu0 0.0
  %447 = vmatpush1.msra.mxu0 0.0
  %448 = vmatprep.subr.mxu0 0.0
  %449 = vmatpush1.msra.mxu0 0.0
  %450 = vmatprep.subr.mxu0 0.0
  %451 = vmatpush1.msra.mxu0 0.0
  %452 = vmatprep.subr.mxu0 0.0
  %453 = vmatpush1.msra.mxu0 0.0
  %454 = vmatprep.subr.mxu0 0.0
  %455 = vmatpush1.msra.mxu0 0.0
  %456 = vmatprep.subr.mxu0 0.0
  %457 = vmatpush1.msra.mxu0 0.0
  %458 = vmatprep.subr.mxu0 0.0
  %459 = vmatpush1.msra.mxu0 0.0
  %460 = vmatprep.subr.mxu0 0.0
  %461 = vmatpush1.msra.mxu0 0.0
  %462 = vmatprep.subr.mxu0 0.0
  %463 = vmatpush1.msra.mxu0 0.0
  %464 = vmatprep.subr.mxu0 0.0
  %465 = vmatpush1.msra.mxu0 0.0
  %466 = vmatprep.subr.mxu0 0.0
  %467 = vmatpush1.msra.mxu0 0.0
  %468 = vmatprep.subr.mxu0 0.0
  %469 = vmatpush1.msra.mxu0 0.0
  %470 = vmatprep.subr.mxu0 0.0
  %471 = vmatpush1.msra.mxu0 0.0
  %472 = vmatprep.subr.mxu0 0.0
  %473 = vmatpush1.msra.mxu0 0.0
  %474 = vmatprep.subr.mxu0 0.0
  %475 = vmatpush1.msra.mxu0 0.0
  %476 = vmatprep.subr.mxu0 0.0
  %477 = vmatpush1.msra.mxu0 0.0
  %478 = vmatprep.subr.mxu0 0.0
  %479 = vmatpush1.msra.mxu0 0.0
  %480 = vmatprep.subr.mxu0 0.0
  %481 = vmatpush1.msra.mxu0 0.0
  %482 = vmatprep.subr.mxu0 0.0
  %483 = vmatpush1.msra.mxu0 0.0
  %484 = vmatprep.subr.mxu0 0.0
  %485 = vmatpush1.msra.mxu0 0.0
  %486 = vmatprep.subr.mxu0 0.0
  %487 = vmatpush1.msra.mxu0 0.0
  %488 = vmatprep.subr.mxu0 0.0
  %489 = vmatpush1.msra.mxu0 0.0
  %490 = vmatprep.subr.mxu0 0.0
  %491 = vmatpush1.msra.mxu0 0.0
  %492 = vmatprep.subr.mxu0 0.0
  %493 = vmatpush1.msra.mxu0 0.0
  %494 = vmatprep.subr.mxu0 0.0
  %495 = vmatpush1.msra.mxu0 0.0
  %496 = vmatprep.subr.mxu0 0.0
  %497 = vmatpush1.msra.mxu0 0.0
  %498 = vmatprep.mubr.f32.mxu0 0.0
  %499 = vmatmul.mubr.f32.gmra.mrb[0].mxu0 %v432
  %v500 = vpop.f32.mrb[0].mxu0
  %v501 = vadd.f32 %v430, %v500
  %v502 = vpop.f32.mrb[0].mxu0
  %503 = vdwg.mxu0
  %v504 = vld [vmem:[%s5 + $0x20] sm:$0xff]
  %v505 = vld [vmem:[%s5 + $0x28] sm:$0xff]
  %v506 = vld [vmem:[%s5 + $0x30] sm:$0xff]
  %v507 = vld [vmem:[%s5 + $0x38] sm:$0xff]
  %v508 = vld [vmem:[%s6 + $0x3] sm:$0x1]
  %509 = vmatprep.subr.mxu0 0.0
  %510 = vmatpush1.msra.mxu0 %v504
  %511 = vmatprep.subr.mxu0 0.0
  %512 = vmatpush1.msra.mxu0 %v505
  %513 = vmatprep.subr.mxu0 0.0
  %514 = vmatpush1.msra.mxu0 %v506
  %515 = vmatprep.subr.mxu0 0.0
  %516 = vmatpush1.msra.mxu0 %v507
  %517 = vmatprep.subr.mxu0 0.0
  %518 = vmatpush1.msra.mxu0 0.0
  %519 = vmatprep.subr.mxu0 0.0
  %520 = vmatpush1.msra.mxu0 0.0
  %521 = vmatprep.subr.mxu0 0.0
  %522 = vmatpush1.msra.mxu0 0.0
  %523 = vmatprep.subr.mxu0 0.0
  %524 = vmatpush1.msra.mxu0 0.0
  %525 = vmatprep.subr.mxu0 0.0
  %526 = vmatpush1.msra.mxu0 0.0
  %527 = vmatprep.subr.mxu0 0.0
  %528 = vmatpush1.msra.mxu0 0.0
  %529 = vmatprep.subr.mxu0 0.0
  %530 = vmatpush1.msra.mxu0 0.0
  %531 = vmatprep.subr.mxu0 0.0
  %532 = vmatpush1.msra.mxu0 0.0
  %533 = vmatprep.subr.mxu0 0.0
  %534 = vmatpush1.msra.mxu0 0.0
  %535 = vmatprep.subr.mxu0 0.0
  %536 = vmatpush1.msra.mxu0 0.0
  %537 = vmatprep.subr.mxu0 0.0
  %538 = vmatpush1.msra.mxu0 0.0
  %539 = vmatprep.subr.mxu0 0.0
  %540 = vmatpush1.msra.mxu0 0.0
  %541 = vmatprep.subr.mxu0 0.0
  %542 = vmatpush1.msra.mxu0 0.0
  %543 = vmatprep.subr.mxu0 0.0
  %544 = vmatpush1.msra.mxu0 0.0
  %545 = vmatprep.subr.mxu0 0.0
  %546 = vmatpush1.msra.mxu0 0.0
  %547 = vmatprep.subr.mxu0 0.0
  %548 = vmatpush1.msra.mxu0 0.0
  %549 = vmatprep.subr.mxu0 0.0
  %550 = vmatpush1.msra.mxu0 0.0
  %551 = vmatprep.subr.mxu0 0.0
  %552 = vmatpush1.msra.mxu0 0.0
  %553 = vmatprep.subr.mxu0 0.0
  %554 = vmatpush1.msra.mxu0 0.0
  %555 = vmatprep.subr.mxu0 0.0
  %556 = vmatpush1.msra.mxu0 0.0
  %557 = vmatprep.subr.mxu0 0.0
  %558 = vmatpush1.msra.mxu0 0.0
  %559 = vmatprep.subr.mxu0 0.0
  %560 = vmatpush1.msra.mxu0 0.0
  %561 = vmatprep.subr.mxu0 0.0
  %562 = vmatpush1.msra.mxu0 0.0
  %563 = vmatprep.subr.mxu0 0.0
  %564 = vmatpush1.msra.mxu0 0.0
  %565 = vmatprep.subr.mxu0 0.0
  %566 = vmatpush1.msra.mxu0 0.0
  %567 = vmatprep.subr.mxu0 0.0
  %568 = vmatpush1.msra.mxu0 0.0
  %569 = vmatprep.subr.mxu0 0.0
  %570 = vmatpush1.msra.mxu0 0.0
  %571 = vmatprep.subr.mxu0 0.0
  %572 = vmatpush1.msra.mxu0 0.0
  %573 = vmatprep.mubr.f32.mxu0 0.0
  %574 = vmatmul.mubr.f32.gmra.mrb[0].mxu0 %v38
  %v575 = vpop.f32.mrb[0].mxu0
  %v576 = vadd.f32 %v508, %v575
  %v577 = vpop.f32.mrb[0].mxu0
  %578 = vdwg.mxu0
  %v579 = vadd.f32 %v501, %v576
  %v580 = vxor.u32 %v579, 2147483648
  %v581 = vmul.f32 %v580, 1.442695
  %v582 = vpow.pop %v581
  %v583 = vadd.f32 %v582, 1.0
  %v584 = vrcp.pop %v583
  %v585 = vmul.f32 1.0, %v584
  %587 = vrot.lane.b32.xlu0 %v576, 64
  %v588 = vpop.permute.xlu0 %587
  %v590 = vmul.f32 %v585, %v588
  %592 = vrot.lane.b32.xlu0 %v590, 64
  %v593 = vpop.permute.xlu0 %592
  %v595 = vadd.f32 %v501, %v593
  %v596 = vtanh.pop %v595
  %v597 = vsub.f32 1.0, %v585
  %599 = vrot.lane.b32.xlu0 %v596, 96
  %v600 = vpop.permute.xlu0 %599
  %v602 = vmul.f32 %v597, %v600
  %v603 = vlaneseq
  %v604 = vshrl.u32 %v603, 7
  %v605 = vsub.s32 0, %v604
  %v606 = vrot.slane %v27, %v605
  %607 = vrot.lane.b32.xlu0 %v606, 32
  %v608 = vpop.permute.xlu0 %607
  %v610 = vmul.f32 %v585, %v608
  %v611 = vadd.f32 %v602, %v610
  %613 = vrot.lane.b32.xlu0 %v611, 96
  %v614 = vpop.permute.xlu0 %613
  %vm616 = vcmask 253952
  %617 = vst.msk [vmem:[%s7] sm:$0x1] %vm616, %v614
  // Predicated region
  $region30: #{attn_decoder_forward.1} parent=0 // pred_check
    _
  $region31: #{attn_decoder_forward.1} parent=0 // pred_check_branch
    %619 = sbr.rel (0) target = $region33
  $region32: #{attn_decoder_forward.1} parent=0 // pred_region
    _
  $region33: #{attn_decoder_forward.1} parent=0 // pred_fallthru
    _
  // Predicated region
  $region34: #{attn_decoder_forward.1} parent=0 // pred_check
    _
  $region35: #{attn_decoder_forward.1} parent=0 // pred_check_branch
    %621 = sbr.rel (0) target = $region37
  $region36: #{attn_decoder_forward.1} parent=0 // pred_region
    _
  $region37: #{attn_decoder_forward.1} parent=0 // pred_fallthru
    _

</llo_original>
